<compile_context>
chip_gen: v5e
topology: v5e:2x2
jax: 0.10.0
libtpu: 0.0.40
codegen_flags: <defaults>
</compile_context>

<pallas_src>
import jax
import jax.numpy as jnp
from jax.experimental import pallas as pl
from jax.experimental.pallas import tpu as pltpu

NUMROWS = 32        # stand-in for constants.NUMROWS
HIDDEN = 64         # logical hidden width (matches the PyTorch module)
HIDDEN_PAD = 128    # lane-dense padded hidden width used inside the kernel
BATCH = 256         # example batch for the demo run (grid of 2 tiles)


def mlp_kernel(x_ref, w1_ref, b1_ref, w2_ref, b2_ref, w3_ref, b3_ref,
               w4_ref, b4_ref, probs_ref, logits_ref):
    # fc1..fc3: bf16 operands on the MXU, f32 accumulation; bias+ReLU in f32.
    h = jnp.dot(x_ref[...], w1_ref[...], preferred_element_type=jnp.float32)
    h = jnp.maximum(h + b1_ref[...], 0.0)

    h = jnp.dot(h.astype(jnp.bfloat16), w2_ref[...],
                preferred_element_type=jnp.float32)
    h = jnp.maximum(h + b2_ref[...], 0.0)

    h = jnp.dot(h.astype(jnp.bfloat16), w3_ref[...],
                preferred_element_type=jnp.float32)
    h = jnp.maximum(h + b3_ref[...], 0.0)

    # fc4 (N == 1): VPU broadcast-multiply + XLU lane reduction instead of a
    # wasted 128x1 MXU pass. w4_ref is the (1, 128) padded weight row (f32).
    logits = jnp.sum(h * w4_ref[...], axis=-1, keepdims=True) + b4_ref[...]
    logits_ref[...] = logits.astype(logits_ref.dtype)

    # softmax over dim=1 of a (TB, 1) tensor: max == logits, exp(0) == 1,
    # sum == 1  ->  result is exactly 1.0. Elide all EUP/XLU softmax work.
    probs_ref[...] = jnp.ones(probs_ref.shape, probs_ref.dtype)


def net_forward(x, packed_params, *, block_b=128, return_logits=False):
    """x: (B, NUMROWS) float32. Returns the module output (B, 1) float32
    (softmax over dim=1 of the fc4 logits, i.e. all-ones). If return_logits,
    also returns the pre-softmax logits (diagnostic output)."""
    w1, b1, w2, b2, w3, b3, w4, b4 = packed_params
    B = x.shape[0]
    if B < block_b:
        block_b = B
    assert B % block_b == 0 and block_b % 8 == 0, (B, block_b)
    grid = (B // block_b,)

    x_bf16 = x.astype(jnp.bfloat16)   # MXU operand dtype on v5e/v6e/v7x

    def resident(shape):
        # Whole array as one block, same block index every grid step:
        # fetched to VMEM once and kept resident across the batch tiles.
        return pl.BlockSpec(shape, lambda i: (0,) * len(shape))

    in_specs = [
        pl.BlockSpec((block_b, NUMROWS), lambda i: (i, 0)),   # x batch tile
        resident(w1.shape), resident(b1.shape),               # fc1
        resident(w2.shape), resident(b2.shape),               # fc2
        resident(w3.shape), resident(b3.shape),               # fc3
        resident(w4.shape), resident(b4.shape),               # fc4
    ]
    out_specs = (
        pl.BlockSpec((block_b, 1), lambda i: (i, 0)),  # probs (module output)
        pl.BlockSpec((block_b, 1), lambda i: (i, 0)),  # logits (diagnostic)
    )

    probs, logits = pl.pallas_call(
        mlp_kernel,
        grid=grid,
        in_specs=in_specs,
        out_specs=out_specs,
        out_shape=(jax.ShapeDtypeStruct((B, 1), jnp.float32),
                   jax.ShapeDtypeStruct((B, 1), jnp.float32)),
        compiler_params=pltpu.CompilerParams(
            dimension_semantics=("parallel",)),
    )(x_bf16, w1, b1, w2, b2, w3, b3, w4, b4)

    if return_logits:
        return probs, logits
    return probs


def init_params(key):
    """Logical params matching the PyTorch layer shapes (weights stored
    transposed vs. torch, i.e. (in_features, out_features))."""
    ks = jax.random.split(key, 8)

    def linear(kw, kb, fan_in, fan_out):
        bound = 1.0 / float(fan_in) ** 0.5
        w = jax.random.uniform(kw, (fan_in, fan_out), jnp.float32, -bound, bound)
        b = jax.random.uniform(kb, (fan_out,), jnp.float32, -bound, bound)
        return w, b

    l1 = linear(ks[0], ks[1], NUMROWS, HIDDEN)
    l2 = linear(ks[2], ks[3], HIDDEN, HIDDEN)
    l3 = linear(ks[4], ks[5], HIDDEN, HIDDEN)
    l4 = linear(ks[6], ks[7], HIDDEN, 1)
    return (l1, l2, l3, l4)


def pack_params(logical_params):
    """Pad hidden 64 -> 128 (zeros: exact through linear+ReLU), cast MXU
    operands to bf16, keep VPU-side params (biases, fc4 row) in f32."""
    (w1, b1), (w2, b2), (w3, b3), (w4, b4) = logical_params
    HP = HIDDEN_PAD

    def pad2(w, rows, cols):
        return jnp.pad(w, ((0, rows - w.shape[0]), (0, cols - w.shape[1])))

    w1p = pad2(w1, NUMROWS, HP).astype(jnp.bfloat16)            # (NUMROWS, 128)
    w2p = pad2(w2, HP, HP).astype(jnp.bfloat16)                 # (128, 128)
    w3p = pad2(w3, HP, HP).astype(jnp.bfloat16)                 # (128, 128)
    b1p = jnp.pad(b1, (0, HP - b1.shape[0])).reshape(1, HP)     # (1, 128) f32
    b2p = jnp.pad(b2, (0, HP - b2.shape[0])).reshape(1, HP)
    b3p = jnp.pad(b3, (0, HP - b3.shape[0])).reshape(1, HP)
    w4p = jnp.pad(w4[:, 0], (0, HP - w4.shape[0])).reshape(1, HP)  # (1, 128) f32
    b4p = b4.reshape(1, 1)                                         # (1, 1) f32
    return (w1p, b1p, w2p, b2p, w3p, b3p, w4p, b4p)


def reference_forward(x, logical_params):
    """Pure-JAX reference with the same mixed precision as the kernel:
    bf16 matmul operands, f32 accumulation, f32 elementwise."""
    (w1, b1), (w2, b2), (w3, b3), (w4, b4) = logical_params

    def mm(a, w):
        return jnp.dot(a.astype(jnp.bfloat16), w.astype(jnp.bfloat16),
                       preferred_element_type=jnp.float32)

    h = jnp.maximum(mm(x, w1) + b1, 0.0)
    h = jnp.maximum(mm(h, w2) + b2, 0.0)
    h = jnp.maximum(mm(h, w3) + b3, 0.0)
    logits = jnp.dot(h, w4, preferred_element_type=jnp.float32) + b4
    probs = jax.nn.softmax(logits, axis=1)   # (B, 1) -> identically 1.0
    return probs, logits


if __name__ == "__main__":
    key = jax.random.PRNGKey(0)
    kx, kp = jax.random.split(key)
    x = jax.random.normal(kx, (BATCH, NUMROWS), jnp.float32)

    logical_params = init_params(kp)
    packed_params = pack_params(logical_params)

    probs, logits = net_forward(x, packed_params, block_b=128,
                                return_logits=True)
    probs = jax.block_until_ready(probs)
    logits = jax.block_until_ready(logits)

    ref_probs, ref_logits = reference_forward(x, logical_params)

    assert probs.shape == (BATCH, 1)
    assert jnp.allclose(probs, ref_probs, atol=1e-6), "softmax output mismatch"
    assert jnp.allclose(logits, ref_logits, atol=2e-3, rtol=2e-3), "logits mismatch"
    print("KERNEL_OK")
</pallas_src>

<mosaic_0001>
module attributes {stable_mosaic.version = 11 : i64} {
  func.func @mlp_kernel(%arg0: i32, %arg1: memref<128x32xbf16, #tpu.memory_space<vmem>>, %arg2: memref<32x128xbf16, #tpu.memory_space<vmem>>, %arg3: memref<1x128xf32, #tpu.memory_space<vmem>>, %arg4: memref<128x128xbf16, #tpu.memory_space<vmem>>, %arg5: memref<1x128xf32, #tpu.memory_space<vmem>>, %arg6: memref<128x128xbf16, #tpu.memory_space<vmem>>, %arg7: memref<1x128xf32, #tpu.memory_space<vmem>>, %arg8: memref<1x128xf32, #tpu.memory_space<vmem>>, %arg9: memref<1x1xf32, #tpu.memory_space<vmem>>, %arg10: memref<128x1xf32, #tpu.memory_space<vmem>>, %arg11: memref<128x1xf32, #tpu.memory_space<vmem>>) attributes {dimension_semantics = [#tpu.dimension_semantics<parallel>], iteration_bounds = array<i64: 2>, scalar_prefetch = 0 : i64, scratch_operands = 0 : i64, tpu.core_type = #tpu.core_type<tc>, window_params = [{transform_indices = @transform_0, window_bounds = array<i64: 128, 32>}, {pipeline_mode = #tpu.pipeline_mode<synchronous>, transform_indices = @transform_1, window_bounds = array<i64: 32, 128>}, {pipeline_mode = #tpu.pipeline_mode<synchronous>, transform_indices = @transform_2, window_bounds = array<i64: 1, 128>}, {pipeline_mode = #tpu.pipeline_mode<synchronous>, transform_indices = @transform_3, window_bounds = array<i64: 128, 128>}, {pipeline_mode = #tpu.pipeline_mode<synchronous>, transform_indices = @transform_4, window_bounds = array<i64: 1, 128>}, {pipeline_mode = #tpu.pipeline_mode<synchronous>, transform_indices = @transform_5, window_bounds = array<i64: 128, 128>}, {pipeline_mode = #tpu.pipeline_mode<synchronous>, transform_indices = @transform_6, window_bounds = array<i64: 1, 128>}, {pipeline_mode = #tpu.pipeline_mode<synchronous>, transform_indices = @transform_7, window_bounds = array<i64: 1, 128>}, {pipeline_mode = #tpu.pipeline_mode<synchronous>, transform_indices = @transform_8, window_bounds = array<i64: 1, 1>}, {transform_indices = @transform_9, window_bounds = array<i64: 128, 1>}, {transform_indices = @transform_10, window_bounds = array<i64: 128, 1>}]} {
    %c0 = arith.constant 0 : index
    %c0_0 = arith.constant 0 : index
    %0 = vector.load %arg1[%c0, %c0_0] : memref<128x32xbf16, #tpu.memory_space<vmem>>, vector<128x32xbf16>
    %c0_1 = arith.constant 0 : index
    %c0_2 = arith.constant 0 : index
    %1 = vector.load %arg2[%c0_1, %c0_2] : memref<32x128xbf16, #tpu.memory_space<vmem>>, vector<32x128xbf16>
    %cst = arith.constant dense<0.000000e+00> : vector<128x128xf32>
    %2 = tpu.matmul %0, %1, %cst {dimension_numbers = #tpu.dot_dimension_numbers<[1], [0], [0], [1], [0, 0, 1, 1], [], []>} : vector<128x32xbf16>, vector<32x128xbf16>, vector<128x128xf32> -> vector<128x128xf32>
    %c0_3 = arith.constant 0 : index
    %c0_4 = arith.constant 0 : index
    %3 = vector.load %arg3[%c0_3, %c0_4] : memref<1x128xf32, #tpu.memory_space<vmem>>, vector<1x128xf32>
    %4 = vector.broadcast %3 : vector<1x128xf32> to vector<128x128xf32>
    %5 = arith.addf %2, %4 : vector<128x128xf32>
    %cst_5 = arith.constant 0.000000e+00 : f32
    %6 = vector.broadcast %cst_5 : f32 to vector<128x128xf32>
    %7 = arith.maximumf %5, %6 : vector<128x128xf32>
    %8 = arith.truncf %7 : vector<128x128xf32> to vector<128x128xbf16>
    %c0_6 = arith.constant 0 : index
    %c0_7 = arith.constant 0 : index
    %9 = vector.load %arg4[%c0_6, %c0_7] : memref<128x128xbf16, #tpu.memory_space<vmem>>, vector<128x128xbf16>
    %cst_8 = arith.constant dense<0.000000e+00> : vector<128x128xf32>
    %10 = tpu.matmul %8, %9, %cst_8 {dimension_numbers = #tpu.dot_dimension_numbers<[1], [0], [0], [1], [0, 0, 1, 1], [], []>} : vector<128x128xbf16>, vector<128x128xbf16>, vector<128x128xf32> -> vector<128x128xf32>
    %c0_9 = arith.constant 0 : index
    %c0_10 = arith.constant 0 : index
    %11 = vector.load %arg5[%c0_9, %c0_10] : memref<1x128xf32, #tpu.memory_space<vmem>>, vector<1x128xf32>
    %12 = vector.broadcast %11 : vector<1x128xf32> to vector<128x128xf32>
    %13 = arith.addf %10, %12 : vector<128x128xf32>
    %cst_11 = arith.constant 0.000000e+00 : f32
    %14 = vector.broadcast %cst_11 : f32 to vector<128x128xf32>
    %15 = arith.maximumf %13, %14 : vector<128x128xf32>
    %16 = arith.truncf %15 : vector<128x128xf32> to vector<128x128xbf16>
    %c0_12 = arith.constant 0 : index
    %c0_13 = arith.constant 0 : index
    %17 = vector.load %arg6[%c0_12, %c0_13] : memref<128x128xbf16, #tpu.memory_space<vmem>>, vector<128x128xbf16>
    %cst_14 = arith.constant dense<0.000000e+00> : vector<128x128xf32>
    %18 = tpu.matmul %16, %17, %cst_14 {dimension_numbers = #tpu.dot_dimension_numbers<[1], [0], [0], [1], [0, 0, 1, 1], [], []>} : vector<128x128xbf16>, vector<128x128xbf16>, vector<128x128xf32> -> vector<128x128xf32>
    %c0_15 = arith.constant 0 : index
    %c0_16 = arith.constant 0 : index
    %19 = vector.load %arg7[%c0_15, %c0_16] : memref<1x128xf32, #tpu.memory_space<vmem>>, vector<1x128xf32>
    %20 = vector.broadcast %19 : vector<1x128xf32> to vector<128x128xf32>
    %21 = arith.addf %18, %20 : vector<128x128xf32>
    %cst_17 = arith.constant 0.000000e+00 : f32
    %22 = vector.broadcast %cst_17 : f32 to vector<128x128xf32>
    %23 = arith.maximumf %21, %22 : vector<128x128xf32>
    %c0_18 = arith.constant 0 : index
    %c0_19 = arith.constant 0 : index
    %24 = vector.load %arg8[%c0_18, %c0_19] : memref<1x128xf32, #tpu.memory_space<vmem>>, vector<1x128xf32>
    %25 = vector.broadcast %24 : vector<1x128xf32> to vector<128x128xf32>
    %26 = arith.mulf %23, %25 : vector<128x128xf32>
    %cst_20 = arith.constant dense<0.000000e+00> : vector<128xf32>
    %27 = vector.multi_reduction <add>, %26, %cst_20 [1] : vector<128x128xf32> to vector<128xf32>
    %28 = vector.shape_cast %27 : vector<128xf32> to vector<128x1xf32>
    %c0_21 = arith.constant 0 : index
    %c0_22 = arith.constant 0 : index
    %29 = vector.load %arg9[%c0_21, %c0_22] : memref<1x1xf32, #tpu.memory_space<vmem>>, vector<1x1xf32>
    %30 = vector.broadcast %29 : vector<1x1xf32> to vector<128x1xf32>
    %31 = arith.addf %28, %30 : vector<128x1xf32>
    %c0_23 = arith.constant 0 : index
    %c0_24 = arith.constant 0 : index
    %32 = vector.load %arg11[%c0_23, %c0_24] : memref<128x1xf32, #tpu.memory_space<vmem>>, vector<128x1xf32>
    tpu.vector_store %arg11[%c0_23, %c0_24], %31 {strides = array<i32>} : memref<128x1xf32, #tpu.memory_space<vmem>>, vector<128x1xf32>,
    %cst_25 = arith.constant 1.000000e+00 : f32
    %33 = vector.broadcast %cst_25 : f32 to vector<128x1xf32>
    %c0_26 = arith.constant 0 : index
    %c0_27 = arith.constant 0 : index
    %34 = vector.load %arg10[%c0_26, %c0_27] : memref<128x1xf32, #tpu.memory_space<vmem>>, vector<128x1xf32>
    tpu.vector_store %arg10[%c0_26, %c0_27], %33 {strides = array<i32>} : memref<128x1xf32, #tpu.memory_space<vmem>>, vector<128x1xf32>,
    return
  }
  func.func @transform_0(%arg0: i32) -> (i32, i32) {
    %c0_i32 = arith.constant 0 : i32
    %c0_i32_0 = arith.constant 0 : i32
    return %arg0, %c0_i32 : i32, i32
  }
  func.func @transform_1(%arg0: i32) -> (i32, i32) {
    %c0_i32 = arith.constant 0 : i32
    %c0_i32_0 = arith.constant 0 : i32
    %c0_i32_1 = arith.constant 0 : i32
    return %c0_i32, %c0_i32_0 : i32, i32
  }
  func.func @transform_2(%arg0: i32) -> (i32, i32) {
    %c0_i32 = arith.constant 0 : i32
    %c0_i32_0 = arith.constant 0 : i32
    %c0_i32_1 = arith.constant 0 : i32
    return %c0_i32, %c0_i32_0 : i32, i32
  }
  func.func @transform_3(%arg0: i32) -> (i32, i32) {
    %c0_i32 = arith.constant 0 : i32
    %c0_i32_0 = arith.constant 0 : i32
    %c0_i32_1 = arith.constant 0 : i32
    return %c0_i32, %c0_i32_0 : i32, i32
  }
  func.func @transform_4(%arg0: i32) -> (i32, i32) {
    %c0_i32 = arith.constant 0 : i32
    %c0_i32_0 = arith.constant 0 : i32
    %c0_i32_1 = arith.constant 0 : i32
    return %c0_i32, %c0_i32_0 : i32, i32
  }
  func.func @transform_5(%arg0: i32) -> (i32, i32) {
    %c0_i32 = arith.constant 0 : i32
    %c0_i32_0 = arith.constant 0 : i32
    %c0_i32_1 = arith.constant 0 : i32
    return %c0_i32, %c0_i32_0 : i32, i32
  }
  func.func @transform_6(%arg0: i32) -> (i32, i32) {
    %c0_i32 = arith.constant 0 : i32
    %c0_i32_0 = arith.constant 0 : i32
    %c0_i32_1 = arith.constant 0 : i32
    return %c0_i32, %c0_i32_0 : i32, i32
  }
  func.func @transform_7(%arg0: i32) -> (i32, i32) {
    %c0_i32 = arith.constant 0 : i32
    %c0_i32_0 = arith.constant 0 : i32
    %c0_i32_1 = arith.constant 0 : i32
    return %c0_i32, %c0_i32_0 : i32, i32
  }
  func.func @transform_8(%arg0: i32) -> (i32, i32) {
    %c0_i32 = arith.constant 0 : i32
    %c0_i32_0 = arith.constant 0 : i32
    %c0_i32_1 = arith.constant 0 : i32
    return %c0_i32, %c0_i32_0 : i32, i32
  }
  func.func @transform_9(%arg0: i32) -> (i32, i32) {
    %c0_i32 = arith.constant 0 : i32
    %c0_i32_0 = arith.constant 0 : i32
    return %arg0, %c0_i32 : i32, i32
  }
  func.func @transform_10(%arg0: i32) -> (i32, i32) {
    %c0_i32 = arith.constant 0 : i32
    %c0_i32_0 = arith.constant 0 : i32
    return %arg0, %c0_i32 : i32, i32
  }
}

</mosaic_0001>

<llo_original>
// kernel: tpu_custom_call.1
$region0: #{tpu_custom_call.1}
  #allocation0 [shape = 'u32[]', space=smem, size = 0x4, offset = 0x4, fixed_abs, tag = 'smem constant byte address 0x4 - core index']
  #allocation1 [shape = 'u32[72,128]{1,0:T(1,128)}', space=vmem, size = 0x9000, scoped, tag = 'internal scratch']
  #allocation2 [shape = 'f32[1,1]{1,0:T(1,128)S(1)}', space=vmem, size = 0x200, scoped, tag = 'scoped memory for tpu_custom_call.1']
  %s0 = inlined_call_operand.vmem [shape: bf16[256,32], index: 0, kind: input, shape index: {}]
  %s1 = inlined_call_operand.vmem [shape: bf16[32,128], index: 1, kind: input, shape index: {}]
  %s2 = inlined_call_operand.vmem [shape: f32[1,128], index: 2, kind: input, shape index: {}]
  %s3 = inlined_call_operand.vmem [shape: bf16[128,128], index: 3, kind: input, shape index: {}]
  %s4 = inlined_call_operand.vmem [shape: f32[1,128], index: 4, kind: input, shape index: {}]
  %s5 = inlined_call_operand.vmem [shape: bf16[128,128], index: 5, kind: input, shape index: {}]
  %s6 = inlined_call_operand.vmem [shape: f32[1,128], index: 6, kind: input, shape index: {}]
  %s7 = inlined_call_operand.vmem [shape: f32[1,128], index: 7, kind: input, shape index: {}]
  %s8 = inlined_call_operand.<no memory space> [shape: f32[1,1], index: 8, kind: input, shape index: {}]
  %s9 = inlined_call_operand.vmem [shape: f32[256,1], index: 9, kind: output, shape index: {0}]
  %s10 = inlined_call_operand.vmem [shape: f32[256,1], index: 10, kind: output, shape index: {1}]
  %11 = xla_tuple %s9, %s10
  %s12 = sld [smem:[#allocation0]]
  $region77: #{tpu_custom_call.1} parent=0
    _
  %s14 = ssub.s32 1, %s12
  %s15 = scalar_select 0, %s14, %s12
  %v16 = vstv %s8
  %17 = vst [vmem:[#allocation2] sm:$0x1] %v16
  loop: start=0, step=1, limit=4
  $region2: #{tpu_custom_call.1} parent=0 // loop_pre_header
    _
  $region3: #{tpu_custom_call.1} parent=0 // loop_header
    %s19 = sphi 0, %s23
    %p20 = scmp.ge.s32.totalorder %s19, 4
    %s29 = sphi 0, %s31
    %s32 = sphi 0, %s29
    %s33 = sphi 0, %s32
    %s49 = sphi 0, %s33
    %s53 = sphi 0, %s53
    %s55 = sphi 0, %s53
    %s56 = sphi 0, %s55
    %s70 = sphi 0, %s56
    %s74 = sphi 0, %s74
    %s76 = sphi 0, %s74
    %s77 = sphi 0, %s76
    %s91 = sphi 0, %s77
    %s95 = sphi 0, %s95
    %s97 = sphi 0, %s95
    %s98 = sphi 0, %s97
    %s112 = sphi 0, %s98
    %s116 = sphi 0, %s116
    %s118 = sphi 0, %s116
    %s119 = sphi 0, %s118
    %s133 = sphi 0, %s119
    %s137 = sphi 0, %s137
    %s139 = sphi 0, %s137
    %s140 = sphi 0, %s139
    %s154 = sphi 0, %s140
    %s158 = sphi 0, %s158
    %s160 = sphi 0, %s158
    %s161 = sphi 0, %s160
    %s175 = sphi 0, %s161
    %s179 = sphi 0, %s179
    %s181 = sphi 0, %s179
    %s182 = sphi 0, %s181
    %s196 = sphi 0, %s182
    %s200 = sphi 0, %s200
    %s202 = sphi 0, %s200
    %s203 = sphi 0, %s202
    %s217 = sphi 0, %s203
    %s223 = sphi 0, %s225
    %s226 = sphi 0, %s223
    %s227 = sphi 0, %s226
    %s243 = sphi 0, %s227
    %s249 = sphi 0, %s251
    %s252 = sphi 0, %s249
    %s253 = sphi 0, %s252
    %s269 = sphi 0, %s253
  $region4: #{tpu_custom_call.1} parent=0 // loop_header_branch
    %22 = sbr.rel (%p20) target = $region8
  $region5: #{tpu_custom_call.1} parent=0 // loop_body
    %s24 = ssub.s32 %s19, 1
    %s25 = ssub.s32 %s19, 2
    %s26 = sadd.s32 %s19, 1
    %s27 = ssub.s32 %s19, %s26
    %p28 = scmp.eq.s32.totalorder %s27, 0
    %s30 = sadd.s32 %s29, 1
    %s31 = scalar_select %p28, %s29, %s30
    %p34 = pneg %p28
    %p35 = scmp.eq.s32.totalorder %s19, 1
    %p36 = por %p34, %p35
    %p37 = scmp.ne.s32.totalorder %s29, %s32
    %p38 = scmp.eq.s32.totalorder %s19, 0
    %p39 = por %p37, %p38
    %p40 = scmp.ne.s32.totalorder %s29, %s32
    %p41 = scmp.eq.s32.totalorder %s24, 1
    %p42 = por %p40, %p41
    %p43 = scmp.ne.s32.totalorder %s32, %s33
    %p44 = scmp.eq.s32.totalorder %s24, 0
    %p45 = por %p43, %p44
    %p46 = scmp.ne.s32.totalorder %s32, %s33
    %p47 = scmp.eq.s32.totalorder %s25, 1
    %p48 = por %p46, %p47
    %p50 = scmp.ne.s32.totalorder %s33, %s49
    %p51 = scmp.eq.s32.totalorder %s25, 0
    %p52 = por %p50, %p51
    %s54 = sadd.s32 %s53, 1
    %p57 = scmp.eq.s32.totalorder %s19, 1
    %p58 = scmp.ne.s32.totalorder %s53, %s55
    %p59 = scmp.eq.s32.totalorder %s19, 0
    %p60 = por %p58, %p59
    %p61 = scmp.ne.s32.totalorder %s53, %s55
    %p62 = scmp.eq.s32.totalorder %s24, 1
    %p63 = por %p61, %p62
    %p64 = scmp.ne.s32.totalorder %s55, %s56
    %p65 = scmp.eq.s32.totalorder %s24, 0
    %p66 = por %p64, %p65
    %p67 = scmp.ne.s32.totalorder %s55, %s56
    %p68 = scmp.eq.s32.totalorder %s25, 1
    %p69 = por %p67, %p68
    %p71 = scmp.ne.s32.totalorder %s56, %s70
    %p72 = scmp.eq.s32.totalorder %s25, 0
    %p73 = por %p71, %p72
    %s75 = sadd.s32 %s74, 1
    %p78 = scmp.eq.s32.totalorder %s19, 1
    %p79 = scmp.ne.s32.totalorder %s74, %s76
    %p80 = scmp.eq.s32.totalorder %s19, 0
    %p81 = por %p79, %p80
    %p82 = scmp.ne.s32.totalorder %s74, %s76
    %p83 = scmp.eq.s32.totalorder %s24, 1
    %p84 = por %p82, %p83
    %p85 = scmp.ne.s32.totalorder %s76, %s77
    %p86 = scmp.eq.s32.totalorder %s24, 0
    %p87 = por %p85, %p86
    %p88 = scmp.ne.s32.totalorder %s76, %s77
    %p89 = scmp.eq.s32.totalorder %s25, 1
    %p90 = por %p88, %p89
    %p92 = scmp.ne.s32.totalorder %s77, %s91
    %p93 = scmp.eq.s32.totalorder %s25, 0
    %p94 = por %p92, %p93
    %s96 = sadd.s32 %s95, 1
    %p99 = scmp.eq.s32.totalorder %s19, 1
    %p100 = scmp.ne.s32.totalorder %s95, %s97
    %p101 = scmp.eq.s32.totalorder %s19, 0
    %p102 = por %p100, %p101
    %p103 = scmp.ne.s32.totalorder %s95, %s97
    %p104 = scmp.eq.s32.totalorder %s24, 1
    %p105 = por %p103, %p104
    %p106 = scmp.ne.s32.totalorder %s97, %s98
    %p107 = scmp.eq.s32.totalorder %s24, 0
    %p108 = por %p106, %p107
    %p109 = scmp.ne.s32.totalorder %s97, %s98
    %p110 = scmp.eq.s32.totalorder %s25, 1
    %p111 = por %p109, %p110
    %p113 = scmp.ne.s32.totalorder %s98, %s112
    %p114 = scmp.eq.s32.totalorder %s25, 0
    %p115 = por %p113, %p114
    %s117 = sadd.s32 %s116, 1
    %p120 = scmp.eq.s32.totalorder %s19, 1
    %p121 = scmp.ne.s32.totalorder %s116, %s118
    %p122 = scmp.eq.s32.totalorder %s19, 0
    %p123 = por %p121, %p122
    %p124 = scmp.ne.s32.totalorder %s116, %s118
    %p125 = scmp.eq.s32.totalorder %s24, 1
    %p126 = por %p124, %p125
    %p127 = scmp.ne.s32.totalorder %s118, %s119
    %p128 = scmp.eq.s32.totalorder %s24, 0
    %p129 = por %p127, %p128
    %p130 = scmp.ne.s32.totalorder %s118, %s119
    %p131 = scmp.eq.s32.totalorder %s25, 1
    %p132 = por %p130, %p131
    %p134 = scmp.ne.s32.totalorder %s119, %s133
    %p135 = scmp.eq.s32.totalorder %s25, 0
    %p136 = por %p134, %p135
    %s138 = sadd.s32 %s137, 1
    %p141 = scmp.eq.s32.totalorder %s19, 1
    %p142 = scmp.ne.s32.totalorder %s137, %s139
    %p143 = scmp.eq.s32.totalorder %s19, 0
    %p144 = por %p142, %p143
    %p145 = scmp.ne.s32.totalorder %s137, %s139
    %p146 = scmp.eq.s32.totalorder %s24, 1
    %p147 = por %p145, %p146
    %p148 = scmp.ne.s32.totalorder %s139, %s140
    %p149 = scmp.eq.s32.totalorder %s24, 0
    %p150 = por %p148, %p149
    %p151 = scmp.ne.s32.totalorder %s139, %s140
    %p152 = scmp.eq.s32.totalorder %s25, 1
    %p153 = por %p151, %p152
    %p155 = scmp.ne.s32.totalorder %s140, %s154
    %p156 = scmp.eq.s32.totalorder %s25, 0
    %p157 = por %p155, %p156
    %s159 = sadd.s32 %s158, 1
    %p162 = scmp.eq.s32.totalorder %s19, 1
    %p163 = scmp.ne.s32.totalorder %s158, %s160
    %p164 = scmp.eq.s32.totalorder %s19, 0
    %p165 = por %p163, %p164
    %p166 = scmp.ne.s32.totalorder %s158, %s160
    %p167 = scmp.eq.s32.totalorder %s24, 1
    %p168 = por %p166, %p167
    %p169 = scmp.ne.s32.totalorder %s160, %s161
    %p170 = scmp.eq.s32.totalorder %s24, 0
    %p171 = por %p169, %p170
    %p172 = scmp.ne.s32.totalorder %s160, %s161
    %p173 = scmp.eq.s32.totalorder %s25, 1
    %p174 = por %p172, %p173
    %p176 = scmp.ne.s32.totalorder %s161, %s175
    %p177 = scmp.eq.s32.totalorder %s25, 0
    %p178 = por %p176, %p177
    %s180 = sadd.s32 %s179, 1
    %p183 = scmp.eq.s32.totalorder %s19, 1
    %p184 = scmp.ne.s32.totalorder %s179, %s181
    %p185 = scmp.eq.s32.totalorder %s19, 0
    %p186 = por %p184, %p185
    %p187 = scmp.ne.s32.totalorder %s179, %s181
    %p188 = scmp.eq.s32.totalorder %s24, 1
    %p189 = por %p187, %p188
    %p190 = scmp.ne.s32.totalorder %s181, %s182
    %p191 = scmp.eq.s32.totalorder %s24, 0
    %p192 = por %p190, %p191
    %p193 = scmp.ne.s32.totalorder %s181, %s182
    %p194 = scmp.eq.s32.totalorder %s25, 1
    %p195 = por %p193, %p194
    %p197 = scmp.ne.s32.totalorder %s182, %s196
    %p198 = scmp.eq.s32.totalorder %s25, 0
    %p199 = por %p197, %p198
    %s201 = sadd.s32 %s200, 1
    %p204 = scmp.eq.s32.totalorder %s19, 1
    %p205 = scmp.ne.s32.totalorder %s200, %s202
    %p206 = scmp.eq.s32.totalorder %s19, 0
    %p207 = por %p205, %p206
    %p208 = scmp.ne.s32.totalorder %s200, %s202
    %p209 = scmp.eq.s32.totalorder %s24, 1
    %p210 = por %p208, %p209
    %p211 = scmp.ne.s32.totalorder %s202, %s203
    %p212 = scmp.eq.s32.totalorder %s24, 0
    %p213 = por %p211, %p212
    %p214 = scmp.ne.s32.totalorder %s202, %s203
    %p215 = scmp.eq.s32.totalorder %s25, 1
    %p216 = por %p214, %p215
    %p218 = scmp.ne.s32.totalorder %s203, %s217
    %p219 = scmp.eq.s32.totalorder %s25, 0
    %p220 = por %p218, %p219
    %s221 = ssub.s32 %s19, %s26
    %p222 = scmp.eq.s32.totalorder %s221, 0
    %s224 = sadd.s32 %s223, 1
    %s225 = scalar_select %p222, %s223, %s224
    %p228 = pneg %p222
    %p229 = scmp.eq.s32.totalorder %s19, 1
    %p230 = por %p228, %p229
    %p231 = scmp.ne.s32.totalorder %s223, %s226
    %p232 = scmp.eq.s32.totalorder %s19, 0
    %p233 = por %p231, %p232
    %p234 = scmp.ne.s32.totalorder %s223, %s226
    %p235 = scmp.eq.s32.totalorder %s24, 1
    %p236 = por %p234, %p235
    %p237 = scmp.ne.s32.totalorder %s226, %s227
    %p238 = scmp.eq.s32.totalorder %s24, 0
    %p239 = por %p237, %p238
    %p240 = scmp.ne.s32.totalorder %s226, %s227
    %p241 = scmp.eq.s32.totalorder %s25, 1
    %p242 = por %p240, %p241
    %p244 = scmp.ne.s32.totalorder %s227, %s243
    %p245 = scmp.eq.s32.totalorder %s25, 0
    %p246 = por %p244, %p245
    %s247 = ssub.s32 %s19, %s26
    %p248 = scmp.eq.s32.totalorder %s247, 0
    %s250 = sadd.s32 %s249, 1
    %s251 = scalar_select %p248, %s249, %s250
    %p254 = pneg %p248
    %p255 = scmp.eq.s32.totalorder %s19, 1
    %p256 = por %p254, %p255
    %p257 = scmp.ne.s32.totalorder %s249, %s252
    %p258 = scmp.eq.s32.totalorder %s19, 0
    %p259 = por %p257, %p258
    %p260 = scmp.ne.s32.totalorder %s249, %s252
    %p261 = scmp.eq.s32.totalorder %s24, 1
    %p262 = por %p260, %p261
    %p263 = scmp.ne.s32.totalorder %s252, %s253
    %p264 = scmp.eq.s32.totalorder %s24, 0
    %p265 = por %p263, %p264
    %p266 = scmp.ne.s32.totalorder %s252, %s253
    %p267 = scmp.eq.s32.totalorder %s25, 1
    %p268 = por %p266, %p267
    %p270 = scmp.ne.s32.totalorder %s253, %s269
    %p271 = scmp.eq.s32.totalorder %s25, 0
    %p272 = por %p270, %p271
    %p273 = scmp.le.s32.totalorder 1, %s19
    %p274 = scmp.lt.s32.totalorder %s19, 3
    %p275 = pnand %p273, %p274
    %p276 = pneg %p275
    // Predicated region
    $region9: #{tpu_custom_call.1} parent=5 // pred_check
      _
    $region10: #{tpu_custom_call.1} parent=5 // pred_check_branch
      %278 = sbr.rel (%p275) target = $region12
    $region11: #{tpu_custom_call.1} parent=5 // pred_region
      %s279 = ssub.s32 %s19, 1
      // Predicated region
      $region13: #{tpu_custom_call.1} parent=11 // pred_check
        %p280 = pneg %p66
      $region14: #{tpu_custom_call.1} parent=11 // pred_check_branch
        %282 = sbr.rel (%p280) target = $region16
      $region15: #{tpu_custom_call.1} parent=11 // pred_region
        _
      $region16: #{tpu_custom_call.1} parent=11 // pred_fallthru
        _
      // Predicated region
      $region17: #{tpu_custom_call.1} parent=11 // pred_check
        %p283 = pneg %p87
      $region18: #{tpu_custom_call.1} parent=11 // pred_check_branch
        %285 = sbr.rel (%p283) target = $region20
      $region19: #{tpu_custom_call.1} parent=11 // pred_region
        _
      $region20: #{tpu_custom_call.1} parent=11 // pred_fallthru
        _
      // Predicated region
      $region21: #{tpu_custom_call.1} parent=11 // pred_check
        %p286 = pneg %p108
      $region22: #{tpu_custom_call.1} parent=11 // pred_check_branch
        %288 = sbr.rel (%p286) target = $region24
      $region23: #{tpu_custom_call.1} parent=11 // pred_region
        _
      $region24: #{tpu_custom_call.1} parent=11 // pred_fallthru
        _
      // Predicated region
      $region25: #{tpu_custom_call.1} parent=11 // pred_check
        %p289 = pneg %p129
      $region26: #{tpu_custom_call.1} parent=11 // pred_check_branch
        %291 = sbr.rel (%p289) target = $region28
      $region27: #{tpu_custom_call.1} parent=11 // pred_region
        _
      $region28: #{tpu_custom_call.1} parent=11 // pred_fallthru
        _
      // Predicated region
      $region29: #{tpu_custom_call.1} parent=11 // pred_check
        %p292 = pneg %p150
      $region30: #{tpu_custom_call.1} parent=11 // pred_check_branch
        %294 = sbr.rel (%p292) target = $region32
      $region31: #{tpu_custom_call.1} parent=11 // pred_region
        _
      $region32: #{tpu_custom_call.1} parent=11 // pred_fallthru
        _
      // Predicated region
      $region33: #{tpu_custom_call.1} parent=11 // pred_check
        %p295 = pneg %p171
      $region34: #{tpu_custom_call.1} parent=11 // pred_check_branch
        %297 = sbr.rel (%p295) target = $region36
      $region35: #{tpu_custom_call.1} parent=11 // pred_region
        _
      $region36: #{tpu_custom_call.1} parent=11 // pred_fallthru
        _
      // Predicated region
      $region37: #{tpu_custom_call.1} parent=11 // pred_check
        %p298 = pneg %p192
      $region38: #{tpu_custom_call.1} parent=11 // pred_check_branch
        %300 = sbr.rel (%p298) target = $region40
      $region39: #{tpu_custom_call.1} parent=11 // pred_region
        _
      $region40: #{tpu_custom_call.1} parent=11 // pred_fallthru
        _
      // Predicated region
      $region41: #{tpu_custom_call.1} parent=11 // pred_check
        %p301 = pneg %p213
      $region42: #{tpu_custom_call.1} parent=11 // pred_check_branch
        %303 = sbr.rel (%p301) target = $region44
      $region43: #{tpu_custom_call.1} parent=11 // pred_region
        _
      $region44: #{tpu_custom_call.1} parent=11 // pred_fallthru
        _
    $region12: #{tpu_custom_call.1} parent=5 // pred_fallthru
      _
    %p304 = scmp.lt.s32.totalorder %s19, 2
    // Predicated region
    $region45: #{tpu_custom_call.1} parent=5 // pred_check
      %p305 = pneg %p304
    $region46: #{tpu_custom_call.1} parent=5 // pred_check_branch
      %307 = sbr.rel (%p305) target = $region48
    $region47: #{tpu_custom_call.1} parent=5 // pred_region
      // Predicated region
      $region49: #{tpu_custom_call.1} parent=47 // pred_check
        %p308 = pneg %p39
      $region50: #{tpu_custom_call.1} parent=47 // pred_check_branch
        %310 = sbr.rel (%p308) target = $region52
      $region51: #{tpu_custom_call.1} parent=47 // pred_region
        %s311 = smul.u32 16, %s19
        %p312 = scmp.lt.s32.totalorder %s311, 31
        %s313 = scalar_select %p312, %s311, 31
        %s314 = smul.addr %s313, 4
        %s315 = scalar_lea.vmem %s0, %s314
        %s316 = smul.u32 16, %s19
      $region52: #{tpu_custom_call.1} parent=47 // pred_fallthru
        _
    $region48: #{tpu_custom_call.1} parent=5 // pred_fallthru
      _
    %p317 = scmp.le.s32.totalorder 1, %s19
    %p318 = scmp.lt.s32.totalorder %s19, 3
    %p319 = pnand %p317, %p318
    %p320 = pneg %p319
    // Predicated region
    $region53: #{tpu_custom_call.1} parent=5 // pred_check
      _
    $region54: #{tpu_custom_call.1} parent=5 // pred_check_branch
      %322 = sbr.rel (%p319) target = $region56
    $region55: #{tpu_custom_call.1} parent=5 // pred_region
      %s323 = ssub.s32 %s19, 1
      %s324 = smul.u32 16, %s24
      %p325 = scmp.lt.s32.totalorder %s324, 31
      %s326 = scalar_select %p325, %s324, 31
      %s327 = smul.addr %s326, 4
      %s328 = scalar_lea.vmem %s0, %s327
      %p329 = pneg %p45
      %p330 = pneg %p42
      %p331 = pneg %p66
      %p332 = pneg %p63
      %p333 = pneg %p87
      %p334 = pneg %p84
      %p335 = pneg %p108
      %p336 = pneg %p105
      %p337 = pneg %p129
      %p338 = pneg %p126
      %p339 = pneg %p150
      %p340 = pneg %p147
      %p341 = pneg %p171
      %p342 = pneg %p168
      %p343 = pneg %p192
      %p344 = pneg %p189
      %p345 = pneg %p213
      %p346 = pneg %p210
      %p347 = pneg %p239
      %p348 = pneg %p236
      %s349 = smul.u32 16, %s24
      %p350 = scmp.lt.s32.totalorder %s349, 31
      %s351 = scalar_select %p350, %s349, 31
      %s352 = smul.addr %s351, 8
      %s353 = scalar_lea.vmem %s9, %s352
      %p354 = pneg %p265
      %p355 = pneg %p262
      %s356 = smul.u32 16, %s24
      %p357 = scmp.lt.s32.totalorder %s356, 31
      %s358 = scalar_select %p357, %s356, 31
      %s359 = smul.addr %s358, 8
      %s360 = scalar_lea.vmem %s10, %s359
      %s361 = smul.u32 16, %s24
      %p362 = scmp.lt.s32.totalorder %s361, 31
      %s363 = scalar_select %p362, %s361, 31
      %s364 = smul.addr %s363, 4
      %s365 = scalar_lea.vmem %s0, %s364
      %s366 = smul.u32 16, %s24
      %s367 = smul.u32 16, %s24
      %p368 = scmp.lt.s32.totalorder %s367, 31
      %s369 = scalar_select %p368, %s367, 31
      %s370 = smul.addr %s369, 8
      %s371 = scalar_lea.vmem %s9, %s370
      %s372 = smul.u32 16, %s24
      %s373 = smul.u32 16, %s24
      %p374 = scmp.lt.s32.totalorder %s373, 31
      %s375 = scalar_select %p374, %s373, 31
      %s376 = smul.addr %s375, 8
      %s377 = scalar_lea.vmem %s10, %s376
      %s378 = smul.u32 16, %s24
      %v380 = vld [vmem:[%s365] sm:$0xf]
      %v381 = vld [vmem:[%s365 + $0x4] sm:$0xf]
      %v382 = vld [vmem:[%s365 + $0x8] sm:$0xf]
      %v383 = vld [vmem:[%s365 + $0xc] sm:$0xf]
      %v384 = vld [vmem:[%s365 + $0x10] sm:$0xf]
      %v385 = vld [vmem:[%s365 + $0x14] sm:$0xf]
      %v386 = vld [vmem:[%s365 + $0x18] sm:$0xf]
      %v387 = vld [vmem:[%s365 + $0x1c] sm:$0xf]
      %v388 = vld [vmem:[%s365 + $0x20] sm:$0xf]
      %v389 = vld [vmem:[%s365 + $0x24] sm:$0xf]
      %v390 = vld [vmem:[%s365 + $0x28] sm:$0xf]
      %v391 = vld [vmem:[%s365 + $0x2c] sm:$0xf]
      %v392 = vld [vmem:[%s365 + $0x30] sm:$0xf]
      %v393 = vld [vmem:[%s365 + $0x34] sm:$0xf]
      %v394 = vld [vmem:[%s365 + $0x38] sm:$0xf]
      %v395 = vld [vmem:[%s365 + $0x3c] sm:$0xf]
      %v396 = vld [vmem:[%s1] sm:$0xf]
      %v397 = vld [vmem:[%s1 + $0x4] sm:$0xf]
      %v398 = vld [vmem:[%s1 + $0x8] sm:$0xf]
      %v399 = vld [vmem:[%s1 + $0xc] sm:$0xf]
      %v400 = vld [vmem:[%s2] sm:$0x1]
      %v402 = vperm.slane %v400, 0
      %v420 = vunpack.c.l.b16 %v380
      %v421 = vunpack.c.l.b16 %v381
      %v422 = vunpack.c.l.b16 %v382
      %v423 = vunpack.c.l.b16 %v383
      %v424 = vunpack.c.l.b16 %v384
      %v425 = vunpack.c.l.b16 %v385
      %v426 = vunpack.c.l.b16 %v386
      %v427 = vunpack.c.l.b16 %v387
      %v428 = vunpack.c.l.b16 %v388
      %v429 = vunpack.c.l.b16 %v389
      %v430 = vunpack.c.l.b16 %v390
      %v431 = vunpack.c.l.b16 %v391
      %v432 = vunpack.c.l.b16 %v392
      %v433 = vunpack.c.l.b16 %v393
      %v434 = vunpack.c.l.b16 %v394
      %v435 = vunpack.c.l.b16 %v395
      %v436 = vpack.c.b16 %v421, %v420
      %v437 = vpack.c.b16 %v423, %v422
      %v438 = vpack.c.b16 %v425, %v424
      %v439 = vpack.c.b16 %v427, %v426
      %v440 = vpack.c.b16 %v429, %v428
      %v441 = vpack.c.b16 %v431, %v430
      %v442 = vpack.c.b16 %v433, %v432
      %v443 = vpack.c.b16 %v435, %v434
      %v448 = vunpack.c.l.b16 %v396
      %v449 = vunpack.c.l.b16 %v397
      %v450 = vunpack.c.l.b16 %v398
      %v451 = vunpack.c.l.b16 %v399
      %v452 = vpack.c.b16 %v449, %v448
      %v453 = vpack.c.b16 %v451, %v450
      %vm456 = vcmask 261120
      %v458 = vsel %vm456, %v436, 0
      %v461 = vsel %vm456, %v437, 0
      %v464 = vsel %vm456, %v438, 0
      %v467 = vsel %vm456, %v439, 0
      %v470 = vsel %vm456, %v440, 0
      %v473 = vsel %vm456, %v441, 0
      %v476 = vsel %vm456, %v442, 0
      %v479 = vsel %vm456, %v443, 0
      %481 = vmatpush.bf16.msra.mxu0 0
      %482 = vmatpush.bf16.msra.mxu0 0
      %483 = vmatpush.bf16.msra.mxu0 0
      %484 = vmatpush.bf16.msra.mxu0 0
      %485 = vmatpush.bf16.msra.mxu0 0
      %486 = vmatpush.bf16.msra.mxu0 0
      %487 = vmatpush.bf16.msra.mxu0 %v453
      %488 = vmatpush.bf16.msra.mxu0 %v452
      %489 = vmatmul.bf16.gmra.mxu0 %v458
      %v490 = vpop.f32.mrf.mxu0
      %v491 = vadd.f32 %v402, %v490
      %v492 = vpop.f32.mrf.mxu0
      %v493 = vadd.f32 %v402, %v492
      %494 = vmatmul.bf16.gmra.mxu0 %v461
      %v495 = vpop.f32.mrf.mxu0
      %v496 = vadd.f32 %v402, %v495
      %v497 = vpop.f32.mrf.mxu0
      %v498 = vadd.f32 %v402, %v497
      %499 = vmatmul.bf16.gmra.mxu0 %v464
      %v500 = vpop.f32.mrf.mxu0
      %v501 = vadd.f32 %v402, %v500
      %v502 = vpop.f32.mrf.mxu0
      %v503 = vadd.f32 %v402, %v502
      %504 = vmatmul.bf16.gmra.mxu0 %v467
      %v505 = vpop.f32.mrf.mxu0
      %v506 = vadd.f32 %v402, %v505
      %v507 = vpop.f32.mrf.mxu0
      %v508 = vadd.f32 %v402, %v507
      %509 = vmatmul.bf16.gmra.mxu0 %v470
      %v510 = vpop.f32.mrf.mxu0
      %v511 = vadd.f32 %v402, %v510
      %v512 = vpop.f32.mrf.mxu0
      %v513 = vadd.f32 %v402, %v512
      %514 = vmatmul.bf16.gmra.mxu0 %v473
      %v515 = vpop.f32.mrf.mxu0
      %v516 = vadd.f32 %v402, %v515
      %v517 = vpop.f32.mrf.mxu0
      %v518 = vadd.f32 %v402, %v517
      %519 = vmatmul.bf16.gmra.mxu0 %v476
      %v520 = vpop.f32.mrf.mxu0
      %v521 = vadd.f32 %v402, %v520
      %v522 = vpop.f32.mrf.mxu0
      %v523 = vadd.f32 %v402, %v522
      %524 = vmatmul.bf16.gmra.mxu0 %v479
      %v525 = vpop.f32.mrf.mxu0
      %v526 = vadd.f32 %v402, %v525
      %v527 = vpop.f32.mrf.mxu0
      %v528 = vadd.f32 %v402, %v527
      %529 = vdwg.mxu0
      %v530 = vmax.f32 %v491, 0.0
      %v531 = vmax.f32 %v493, 0.0
      %v532 = vmax.f32 %v496, 0.0
      %v533 = vmax.f32 %v498, 0.0
      %v534 = vmax.f32 %v501, 0.0
      %v535 = vmax.f32 %v503, 0.0
      %v536 = vmax.f32 %v506, 0.0
      %v537 = vmax.f32 %v508, 0.0
      %v538 = vmax.f32 %v511, 0.0
      %v539 = vmax.f32 %v513, 0.0
      %v540 = vmax.f32 %v516, 0.0
      %v541 = vmax.f32 %v518, 0.0
      %v542 = vmax.f32 %v521, 0.0
      %v543 = vmax.f32 %v523, 0.0
      %v544 = vmax.f32 %v526, 0.0
      %v545 = vmax.f32 %v528, 0.0
      %v546 = vpack.c.bf16 %v531, %v530
      %v547 = vpack.c.bf16 %v533, %v532
      %v548 = vpack.c.bf16 %v535, %v534
      %v549 = vpack.c.bf16 %v537, %v536
      %v550 = vpack.c.bf16 %v539, %v538
      %v551 = vpack.c.bf16 %v541, %v540
      %v552 = vpack.c.bf16 %v543, %v542
      %v553 = vpack.c.bf16 %v545, %v544
      %v554 = vld [vmem:[%s3] sm:$0xf]
      %v555 = vld [vmem:[%s3 + $0x4] sm:$0xf]
      %v556 = vld [vmem:[%s3 + $0x8] sm:$0xf]
      %v557 = vld [vmem:[%s3 + $0xc] sm:$0xf]
      %v558 = vld [vmem:[%s3 + $0x10] sm:$0xf]
      %v559 = vld [vmem:[%s3 + $0x14] sm:$0xf]
      %v560 = vld [vmem:[%s3 + $0x18] sm:$0xf]
      %v561 = vld [vmem:[%s3 + $0x1c] sm:$0xf]
      %v562 = vld [vmem:[%s3 + $0x20] sm:$0xf]
      %v563 = vld [vmem:[%s3 + $0x24] sm:$0xf]
      %v564 = vld [vmem:[%s3 + $0x28] sm:$0xf]
      %v565 = vld [vmem:[%s3 + $0x2c] sm:$0xf]
      %v566 = vld [vmem:[%s3 + $0x30] sm:$0xf]
      %v567 = vld [vmem:[%s3 + $0x34] sm:$0xf]
      %v568 = vld [vmem:[%s3 + $0x38] sm:$0xf]
      %v569 = vld [vmem:[%s3 + $0x3c] sm:$0xf]
      %v570 = vld [vmem:[%s4] sm:$0x1]
      %v572 = vperm.slane %v570, 0
      %v590 = vunpack.c.l.b16 %v554
      %v591 = vunpack.c.l.b16 %v555
      %v592 = vunpack.c.l.b16 %v556
      %v593 = vunpack.c.l.b16 %v557
      %v594 = vunpack.c.l.b16 %v558
      %v595 = vunpack.c.l.b16 %v559
      %v596 = vunpack.c.l.b16 %v560
      %v597 = vunpack.c.l.b16 %v561
      %v598 = vunpack.c.l.b16 %v562
      %v599 = vunpack.c.l.b16 %v563
      %v600 = vunpack.c.l.b16 %v564
      %v601 = vunpack.c.l.b16 %v565
      %v602 = vunpack.c.l.b16 %v566
      %v603 = vunpack.c.l.b16 %v567
      %v604 = vunpack.c.l.b16 %v568
      %v605 = vunpack.c.l.b16 %v569
      %v606 = vpack.c.b16 %v591, %v590
      %v607 = vpack.c.b16 %v593, %v592
      %v608 = vpack.c.b16 %v595, %v594
      %v609 = vpack.c.b16 %v597, %v596
      %v610 = vpack.c.b16 %v599, %v598
      %v611 = vpack.c.b16 %v601, %v600
      %v612 = vpack.c.b16 %v603, %v602
      %v613 = vpack.c.b16 %v605, %v604
      %622 = vmatpush.bf16.msra.mxu0 %v613
      %623 = vmatpush.bf16.msra.mxu0 %v612
      %624 = vmatpush.bf16.msra.mxu0 %v611
      %625 = vmatpush.bf16.msra.mxu0 %v610
      %626 = vmatpush.bf16.msra.mxu0 %v609
      %627 = vmatpush.bf16.msra.mxu0 %v608
      %628 = vmatpush.bf16.msra.mxu0 %v607
      %629 = vmatpush.bf16.msra.mxu0 %v606
      %630 = vmatmul.bf16.gmra.mxu0 %v546
      %v631 = vpop.f32.mrf.mxu0
      %v632 = vadd.f32 %v572, %v631
      %v633 = vpop.f32.mrf.mxu0
      %v634 = vadd.f32 %v572, %v633
      %635 = vmatmul.bf16.gmra.mxu0 %v547
      %v636 = vpop.f32.mrf.mxu0
      %v637 = vadd.f32 %v572, %v636
      %v638 = vpop.f32.mrf.mxu0
      %v639 = vadd.f32 %v572, %v638
      %640 = vmatmul.bf16.gmra.mxu0 %v548
      %v641 = vpop.f32.mrf.mxu0
      %v642 = vadd.f32 %v572, %v641
      %v643 = vpop.f32.mrf.mxu0
      %v644 = vadd.f32 %v572, %v643
      %645 = vmatmul.bf16.gmra.mxu0 %v549
      %v646 = vpop.f32.mrf.mxu0
      %v647 = vadd.f32 %v572, %v646
      %v648 = vpop.f32.mrf.mxu0
      %v649 = vadd.f32 %v572, %v648
      %650 = vmatmul.bf16.gmra.mxu0 %v550
      %v651 = vpop.f32.mrf.mxu0
      %v652 = vadd.f32 %v572, %v651
      %v653 = vpop.f32.mrf.mxu0
      %v654 = vadd.f32 %v572, %v653
      %655 = vmatmul.bf16.gmra.mxu0 %v551
      %v656 = vpop.f32.mrf.mxu0
      %v657 = vadd.f32 %v572, %v656
      %v658 = vpop.f32.mrf.mxu0
      %v659 = vadd.f32 %v572, %v658
      %660 = vmatmul.bf16.gmra.mxu0 %v552
      %v661 = vpop.f32.mrf.mxu0
      %v662 = vadd.f32 %v572, %v661
      %v663 = vpop.f32.mrf.mxu0
      %v664 = vadd.f32 %v572, %v663
      %665 = vmatmul.bf16.gmra.mxu0 %v553
      %v666 = vpop.f32.mrf.mxu0
      %v667 = vadd.f32 %v572, %v666
      %v668 = vpop.f32.mrf.mxu0
      %v669 = vadd.f32 %v572, %v668
      %670 = vdwg.mxu0
      %v671 = vmax.f32 %v632, 0.0
      %v672 = vmax.f32 %v634, 0.0
      %v673 = vmax.f32 %v637, 0.0
      %v674 = vmax.f32 %v639, 0.0
      %v675 = vmax.f32 %v642, 0.0
      %v676 = vmax.f32 %v644, 0.0
      %v677 = vmax.f32 %v647, 0.0
      %v678 = vmax.f32 %v649, 0.0
      %v679 = vmax.f32 %v652, 0.0
      %v680 = vmax.f32 %v654, 0.0
      %v681 = vmax.f32 %v657, 0.0
      %v682 = vmax.f32 %v659, 0.0
      %v683 = vmax.f32 %v662, 0.0
      %v684 = vmax.f32 %v664, 0.0
      %v685 = vmax.f32 %v667, 0.0
      %v686 = vmax.f32 %v669, 0.0
      %v687 = vpack.c.bf16 %v672, %v671
      %v688 = vpack.c.bf16 %v674, %v673
      %v689 = vpack.c.bf16 %v676, %v675
      %v690 = vpack.c.bf16 %v678, %v677
      %v691 = vpack.c.bf16 %v680, %v679
      %v692 = vpack.c.bf16 %v682, %v681
      %v693 = vpack.c.bf16 %v684, %v683
      %v694 = vpack.c.bf16 %v686, %v685
      %v695 = vld [vmem:[%s5] sm:$0xf]
      %v696 = vld [vmem:[%s5 + $0x4] sm:$0xf]
      %v697 = vld [vmem:[%s5 + $0x8] sm:$0xf]
      %v698 = vld [vmem:[%s5 + $0xc] sm:$0xf]
      %v699 = vld [vmem:[%s5 + $0x10] sm:$0xf]
      %v700 = vld [vmem:[%s5 + $0x14] sm:$0xf]
      %v701 = vld [vmem:[%s5 + $0x18] sm:$0xf]
      %v702 = vld [vmem:[%s5 + $0x1c] sm:$0xf]
      %v703 = vld [vmem:[%s5 + $0x20] sm:$0xf]
      %v704 = vld [vmem:[%s5 + $0x24] sm:$0xf]
      %v705 = vld [vmem:[%s5 + $0x28] sm:$0xf]
      %v706 = vld [vmem:[%s5 + $0x2c] sm:$0xf]
      %v707 = vld [vmem:[%s5 + $0x30] sm:$0xf]
      %v708 = vld [vmem:[%s5 + $0x34] sm:$0xf]
      %v709 = vld [vmem:[%s5 + $0x38] sm:$0xf]
      %v710 = vld [vmem:[%s5 + $0x3c] sm:$0xf]
      %v711 = vld [vmem:[%s6] sm:$0x1]
      %v713 = vperm.slane %v711, 0
      %v731 = vunpack.c.l.b16 %v695
      %v732 = vunpack.c.l.b16 %v696
      %v733 = vunpack.c.l.b16 %v697
      %v734 = vunpack.c.l.b16 %v698
      %v735 = vunpack.c.l.b16 %v699
      %v736 = vunpack.c.l.b16 %v700
      %v737 = vunpack.c.l.b16 %v701
      %v738 = vunpack.c.l.b16 %v702
      %v739 = vunpack.c.l.b16 %v703
      %v740 = vunpack.c.l.b16 %v704
      %v741 = vunpack.c.l.b16 %v705
      %v742 = vunpack.c.l.b16 %v706
      %v743 = vunpack.c.l.b16 %v707
      %v744 = vunpack.c.l.b16 %v708
      %v745 = vunpack.c.l.b16 %v709
      %v746 = vunpack.c.l.b16 %v710
      %v747 = vpack.c.b16 %v732, %v731
      %v748 = vpack.c.b16 %v734, %v733
      %v749 = vpack.c.b16 %v736, %v735
      %v750 = vpack.c.b16 %v738, %v737
      %v751 = vpack.c.b16 %v740, %v739
      %v752 = vpack.c.b16 %v742, %v741
      %v753 = vpack.c.b16 %v744, %v743
      %v754 = vpack.c.b16 %v746, %v745
      %763 = vmatpush.bf16.msra.mxu0 %v754
      %764 = vmatpush.bf16.msra.mxu0 %v753
      %765 = vmatpush.bf16.msra.mxu0 %v752
      %766 = vmatpush.bf16.msra.mxu0 %v751
      %767 = vmatpush.bf16.msra.mxu0 %v750
      %768 = vmatpush.bf16.msra.mxu0 %v749
      %769 = vmatpush.bf16.msra.mxu0 %v748
      %770 = vmatpush.bf16.msra.mxu0 %v747
      %771 = vmatmul.bf16.gmra.mxu0 %v687
      %v772 = vpop.f32.mrf.mxu0
      %v773 = vadd.f32 %v713, %v772
      %v774 = vpop.f32.mrf.mxu0
      %v775 = vadd.f32 %v713, %v774
      %776 = vmatmul.bf16.gmra.mxu0 %v688
      %v777 = vpop.f32.mrf.mxu0
      %v778 = vadd.f32 %v713, %v777
      %v779 = vpop.f32.mrf.mxu0
      %v780 = vadd.f32 %v713, %v779
      %781 = vmatmul.bf16.gmra.mxu0 %v689
      %v782 = vpop.f32.mrf.mxu0
      %v783 = vadd.f32 %v713, %v782
      %v784 = vpop.f32.mrf.mxu0
      %v785 = vadd.f32 %v713, %v784
      %786 = vmatmul.bf16.gmra.mxu0 %v690
      %v787 = vpop.f32.mrf.mxu0
      %v788 = vadd.f32 %v713, %v787
      %v789 = vpop.f32.mrf.mxu0
      %v790 = vadd.f32 %v713, %v789
      %791 = vmatmul.bf16.gmra.mxu0 %v691
      %v792 = vpop.f32.mrf.mxu0
      %v793 = vadd.f32 %v713, %v792
      %v794 = vpop.f32.mrf.mxu0
      %v795 = vadd.f32 %v713, %v794
      %796 = vmatmul.bf16.gmra.mxu0 %v692
      %v797 = vpop.f32.mrf.mxu0
      %v798 = vadd.f32 %v713, %v797
      %v799 = vpop.f32.mrf.mxu0
      %v800 = vadd.f32 %v713, %v799
      %801 = vmatmul.bf16.gmra.mxu0 %v693
      %v802 = vpop.f32.mrf.mxu0
      %v803 = vadd.f32 %v713, %v802
      %v804 = vpop.f32.mrf.mxu0
      %v805 = vadd.f32 %v713, %v804
      %806 = vmatmul.bf16.gmra.mxu0 %v694
      %v807 = vpop.f32.mrf.mxu0
      %v808 = vadd.f32 %v713, %v807
      %v809 = vpop.f32.mrf.mxu0
      %v810 = vadd.f32 %v713, %v809
      %811 = vdwg.mxu0
      %v812 = vmax.f32 %v773, 0.0
      %v813 = vmax.f32 %v775, 0.0
      %v814 = vmax.f32 %v778, 0.0
      %v815 = vmax.f32 %v780, 0.0
      %v816 = vmax.f32 %v783, 0.0
      %v817 = vmax.f32 %v785, 0.0
      %v818 = vmax.f32 %v788, 0.0
      %v819 = vmax.f32 %v790, 0.0
      %v820 = vmax.f32 %v793, 0.0
      %v821 = vmax.f32 %v795, 0.0
      %v822 = vmax.f32 %v798, 0.0
      %v823 = vmax.f32 %v800, 0.0
      %v824 = vmax.f32 %v803, 0.0
      %v825 = vmax.f32 %v805, 0.0
      %v826 = vmax.f32 %v808, 0.0
      %v827 = vmax.f32 %v810, 0.0
      %v828 = vld [vmem:[%s7] sm:$0x1]
      %v830 = vperm.slane %v828, 0
      %v832 = vmul.f32 %v812, %v830
      %v833 = vmul.f32 %v813, %v830
      %v834 = vmul.f32 %v814, %v830
      %v835 = vmul.f32 %v815, %v830
      %v836 = vmul.f32 %v816, %v830
      %v837 = vmul.f32 %v817, %v830
      %v838 = vmul.f32 %v818, %v830
      %v839 = vmul.f32 %v819, %v830
      %v840 = vmul.f32 %v820, %v830
      %v841 = vmul.f32 %v821, %v830
      %v842 = vmul.f32 %v822, %v830
      %v843 = vmul.f32 %v823, %v830
      %v844 = vmul.f32 %v824, %v830
      %v845 = vmul.f32 %v825, %v830
      %v846 = vmul.f32 %v826, %v830
      %v847 = vmul.f32 %v827, %v830
      %848 = vadd.xlane.f32.xlu0 %v832
      %v849 = vpop.xlane.xlu0 %848
      %850 = vadd.xlane.f32.xlu0 %v833
      %v851 = vpop.xlane.xlu0 %850
      %852 = vadd.xlane.f32.xlu0 %v834
      %v853 = vpop.xlane.xlu0 %852
      %854 = vadd.xlane.f32.xlu0 %v835
      %v855 = vpop.xlane.xlu0 %854
      %856 = vadd.xlane.f32.xlu0 %v836
      %v857 = vpop.xlane.xlu0 %856
      %858 = vadd.xlane.f32.xlu0 %v837
      %v859 = vpop.xlane.xlu0 %858
      %860 = vadd.xlane.f32.xlu0 %v838
      %v861 = vpop.xlane.xlu0 %860
      %862 = vadd.xlane.f32.xlu0 %v839
      %v863 = vpop.xlane.xlu0 %862
      %864 = vadd.xlane.f32.xlu0 %v840
      %v865 = vpop.xlane.xlu0 %864
      %866 = vadd.xlane.f32.xlu0 %v841
      %v867 = vpop.xlane.xlu0 %866
      %868 = vadd.xlane.f32.xlu0 %v842
      %v869 = vpop.xlane.xlu0 %868
      %870 = vadd.xlane.f32.xlu0 %v843
      %v871 = vpop.xlane.xlu0 %870
      %872 = vadd.xlane.f32.xlu0 %v844
      %v873 = vpop.xlane.xlu0 %872
      %874 = vadd.xlane.f32.xlu0 %v845
      %v875 = vpop.xlane.xlu0 %874
      %876 = vadd.xlane.f32.xlu0 %v846
      %v877 = vpop.xlane.xlu0 %876
      %878 = vadd.xlane.f32.xlu0 %v847
      %v879 = vpop.xlane.xlu0 %878
      %v880 = vld [vmem:[#allocation2] sm:$0x1]
      %v882 = vperm.slane %v880, 0
      %v884 = vadd.f32 %v849, %v882
      %v885 = vadd.f32 %v851, %v882
      %v886 = vadd.f32 %v853, %v882
      %v887 = vadd.f32 %v855, %v882
      %v888 = vadd.f32 %v857, %v882
      %v889 = vadd.f32 %v859, %v882
      %v890 = vadd.f32 %v861, %v882
      %v891 = vadd.f32 %v863, %v882
      %v892 = vadd.f32 %v865, %v882
      %v893 = vadd.f32 %v867, %v882
      %v894 = vadd.f32 %v869, %v882
      %v895 = vadd.f32 %v871, %v882
      %v896 = vadd.f32 %v873, %v882
      %v897 = vadd.f32 %v875, %v882
      %v898 = vadd.f32 %v877, %v882
      %v899 = vadd.f32 %v879, %v882
      %vm900 = vcmask 7168
      %901 = vst.msk [vmem:[%s377] sm:$0xff] %vm900, %v884
      %902 = vst.msk [vmem:[%s377 + $0x8] sm:$0xff] %vm900, %v885
      %903 = vst.msk [vmem:[%s377 + $0x10] sm:$0xff] %vm900, %v886
      %904 = vst.msk [vmem:[%s377 + $0x18] sm:$0xff] %vm900, %v887
      %905 = vst.msk [vmem:[%s377 + $0x20] sm:$0xff] %vm900, %v888
      %906 = vst.msk [vmem:[%s377 + $0x28] sm:$0xff] %vm900, %v889
      %907 = vst.msk [vmem:[%s377 + $0x30] sm:$0xff] %vm900, %v890
      %908 = vst.msk [vmem:[%s377 + $0x38] sm:$0xff] %vm900, %v891
      %909 = vst.msk [vmem:[%s377 + $0x40] sm:$0xff] %vm900, %v892
      %910 = vst.msk [vmem:[%s377 + $0x48] sm:$0xff] %vm900, %v893
      %911 = vst.msk [vmem:[%s377 + $0x50] sm:$0xff] %vm900, %v894
      %912 = vst.msk [vmem:[%s377 + $0x58] sm:$0xff] %vm900, %v895
      %913 = vst.msk [vmem:[%s377 + $0x60] sm:$0xff] %vm900, %v896
      %914 = vst.msk [vmem:[%s377 + $0x68] sm:$0xff] %vm900, %v897
      %915 = vst.msk [vmem:[%s377 + $0x70] sm:$0xff] %vm900, %v898
      %916 = vst.msk [vmem:[%s377 + $0x78] sm:$0xff] %vm900, %v899
      %917 = vst.msk [vmem:[%s371] sm:$0xff] %vm900, 1.0
      %918 = vst.msk [vmem:[%s371 + $0x8] sm:$0xff] %vm900, 1.0
      %919 = vst.msk [vmem:[%s371 + $0x10] sm:$0xff] %vm900, 1.0
      %920 = vst.msk [vmem:[%s371 + $0x18] sm:$0xff] %vm900, 1.0
      %921 = vst.msk [vmem:[%s371 + $0x20] sm:$0xff] %vm900, 1.0
      %922 = vst.msk [vmem:[%s371 + $0x28] sm:$0xff] %vm900, 1.0
      %923 = vst.msk [vmem:[%s371 + $0x30] sm:$0xff] %vm900, 1.0
      %924 = vst.msk [vmem:[%s371 + $0x38] sm:$0xff] %vm900, 1.0
      %925 = vst.msk [vmem:[%s371 + $0x40] sm:$0xff] %vm900, 1.0
      %926 = vst.msk [vmem:[%s371 + $0x48] sm:$0xff] %vm900, 1.0
      %927 = vst.msk [vmem:[%s371 + $0x50] sm:$0xff] %vm900, 1.0
      %928 = vst.msk [vmem:[%s371 + $0x58] sm:$0xff] %vm900, 1.0
      %929 = vst.msk [vmem:[%s371 + $0x60] sm:$0xff] %vm900, 1.0
      %930 = vst.msk [vmem:[%s371 + $0x68] sm:$0xff] %vm900, 1.0
      %931 = vst.msk [vmem:[%s371 + $0x70] sm:$0xff] %vm900, 1.0
      %932 = vst.msk [vmem:[%s371 + $0x78] sm:$0xff] %vm900, 1.0
      %s933 = smul.u32 16, %s24
      %p934 = scmp.lt.s32.totalorder %s933, 31
      %s935 = scalar_select %p934, %s933, 31
      %s936 = smul.addr %s935, 8
      %s937 = scalar_lea.vmem %s9, %s936
      %s938 = smul.u32 16, %s24
      %p939 = scmp.lt.s32.totalorder %s938, 31
      %s940 = scalar_select %p939, %s938, 31
      %s941 = smul.addr %s940, 8
      %s942 = scalar_lea.vmem %s10, %s941
      // Predicated region
      $region57: #{tpu_custom_call.1} parent=55 // pred_check
        %p943 = pneg %p236
      $region58: #{tpu_custom_call.1} parent=55 // pred_check_branch
        %945 = sbr.rel (%p943) target = $region60
      $region59: #{tpu_custom_call.1} parent=55 // pred_region
        %s946 = smul.u32 16, %s24
      $region60: #{tpu_custom_call.1} parent=55 // pred_fallthru
        _
      // Predicated region
      $region61: #{tpu_custom_call.1} parent=55 // pred_check
        %p947 = pneg %p262
      $region62: #{tpu_custom_call.1} parent=55 // pred_check_branch
        %949 = sbr.rel (%p947) target = $region64
      $region63: #{tpu_custom_call.1} parent=55 // pred_region
        %s950 = smul.u32 16, %s24
      $region64: #{tpu_custom_call.1} parent=55 // pred_fallthru
        _
    $region56: #{tpu_custom_call.1} parent=5 // pred_fallthru
      _
    %p951 = scmp.le.s32.totalorder 2, %s19
    // Predicated region
    $region65: #{tpu_custom_call.1} parent=5 // pred_check
      %p952 = pneg %p951
    $region66: #{tpu_custom_call.1} parent=5 // pred_check_branch
      %954 = sbr.rel (%p952) target = $region68
    $region67: #{tpu_custom_call.1} parent=5 // pred_region
      %s955 = ssub.s32 %s19, 2
      // Predicated region
      $region69: #{tpu_custom_call.1} parent=67 // pred_check
        %p956 = pneg %p242
      $region70: #{tpu_custom_call.1} parent=67 // pred_check_branch
        %958 = sbr.rel (%p956) target = $region72
      $region71: #{tpu_custom_call.1} parent=67 // pred_region
        %s959 = smul.u32 16, %s25
        %p960 = scmp.lt.s32.totalorder %s959, 31
        %s961 = scalar_select %p960, %s959, 31
        %s962 = smul.addr %s961, 8
        %s963 = scalar_lea.vmem %s9, %s962
      $region72: #{tpu_custom_call.1} parent=67 // pred_fallthru
        _
      // Predicated region
      $region73: #{tpu_custom_call.1} parent=67 // pred_check
        %p964 = pneg %p268
      $region74: #{tpu_custom_call.1} parent=67 // pred_check_branch
        %966 = sbr.rel (%p964) target = $region76
      $region75: #{tpu_custom_call.1} parent=67 // pred_region
        %s967 = smul.u32 16, %s25
        %p968 = scmp.lt.s32.totalorder %s967, 31
        %s969 = scalar_select %p968, %s967, 31
        %s970 = smul.addr %s969, 8
        %s971 = scalar_lea.vmem %s10, %s970
      $region76: #{tpu_custom_call.1} parent=67 // pred_fallthru
        _
    $region68: #{tpu_custom_call.1} parent=5 // pred_fallthru
      _
  $region6: #{tpu_custom_call.1} parent=0 // loop_footer
    %s23 = sadd.s32 1, %s19
  $region7: #{tpu_custom_call.1} parent=0 // loop_footer_branch
    %18 = sbr.rel target = $region3
  $region8: #{tpu_custom_call.1} parent=0 // loop_exit
    _

</llo_original>
